<compile_context>
chip_gen: v5e
topology: v5e:2x2
jax: 0.10.0
libtpu: 0.0.40
codegen_flags: <defaults>
</compile_context>

<pallas_src>
import jax
import jax.numpy as jnp
from jax import lax
from jax.experimental import pallas as pl
from jax.experimental.pallas import tpu as pltpu


def _stochastic_conv_kernel(wb_ref, p_ref, o_ref):
    """Single-step kernel: all conv blocks at once.

    wb_ref : (CKK, T)  weights broadcast over the flattened output index
    p_ref  : (CKK, T)  im2col patches, T = N*num_blocks*oh*ow  (lane-dense)
    o_ref  : (1, T)    out[t] = sum_k wb[k, t] * p[k, t]
    """
    prod = wb_ref[...] * p_ref[...]
    o_ref[...] = jnp.sum(prod, axis=0, keepdims=True)


def stochastic_conv4_forward(x, weights, key, *, stride, kernel_size, output_size):
    """
    x       : (N, 3, H, W) float32, NCHW (like the PyTorch module)
    weights : (num_blocks, 1, 3, K, K)  one Conv2d(3->1, bias=False) per block
    returns : (out, starts)  with out : (N, num_blocks, oh, ow)
    """
    N, C, H, W = x.shape
    num_blocks = weights.shape[0]
    K = kernel_size
    s = stride
    out_h = output_size[0]
    out_w = out_h
    slice_size = (out_h - 1) * s + K
    # Implicit constraint inherited from the PyTorch module (starts is indexed by block idx).
    assert num_blocks <= output_size[0], "out_channels must be <= output_size[0]"

    # torch.randint(low=slice_size, high=x.shape[3], size=(output_size[0],))
    # TODO(synk): torch uses the global RNG; here an explicit PRNGKey is used for determinism.
    ends = jax.random.randint(key, (output_size[0],), slice_size, W)
    starts = ends - slice_size          # (output_size[0],) int32
    st = starts[:num_blocks]            # window start per conv block

    CKK = C * K * K
    T = N * num_blocks * out_h * out_w  # flattened (n, b, oh, ow) -> the lane dim (=128 here)

    # ---- vectorized im2col for all blocks via exact one-hot selection ----
    # rows[b, oh, kh] = st[b] + s*oh + kh ; cols[b, ow, kw] = st[b] + s*ow + kw
    rows = (st[:, None, None] + s * jnp.arange(out_h)[None, :, None]
            + jnp.arange(K)[None, None, :])                               # (B, oh, K)
    cols = (st[:, None, None] + s * jnp.arange(out_w)[None, :, None]
            + jnp.arange(K)[None, None, :])                               # (B, ow, K)
    rsel = (rows[..., None] == jnp.arange(H)).astype(x.dtype)             # (B, oh, K, H)
    csel = (cols[..., None] == jnp.arange(W)).astype(x.dtype)             # (B, ow, K, W)
    hi = lax.Precision.HIGHEST  # keep one-hot * value exact in f32
    t1 = jnp.einsum('nchw,bvuw->ncbhvu', x, csel, precision=hi)           # (N,C,B,H,ow,Kw)
    patches = jnp.einsum('ncbhvu,bpqh->ncbpqvu', t1, rsel, precision=hi)  # (N,C,B,oh,Kh,ow,Kw)
    # -> (c, kh, kw, n, b, oh, ow) -> (CKK, T); row order (c,kh,kw) matches weight flatten
    p_all = patches.transpose(1, 4, 6, 0, 2, 3, 5).reshape(CKK, T).astype(jnp.float32)

    # weights broadcast over the flattened output index; resident for the single kernel step
    w_flat = weights.reshape(num_blocks, CKK).astype(jnp.float32)         # (B, CKK)
    wb = jnp.broadcast_to(
        w_flat.T[:, None, :, None, None],
        (CKK, N, num_blocks, out_h, out_w)).reshape(CKK, T)

    out_row = pl.pallas_call(
        _stochastic_conv_kernel,
        out_shape=jax.ShapeDtypeStruct((1, T), jnp.float32),
        grid_spec=pltpu.PrefetchScalarGridSpec(
            num_scalar_prefetch=0,
            grid=(1,),
            in_specs=[
                pl.BlockSpec((CKK, T), lambda i: (0, 0)),
                pl.BlockSpec((CKK, T), lambda i: (0, 0)),
            ],
            out_specs=pl.BlockSpec((1, T), lambda i: (0, 0)),
        ),
        compiler_params=pltpu.CompilerParams(
            dimension_semantics=("arbitrary",)),
        cost_estimate=pl.CostEstimate(
            flops=2 * CKK * T,
            transcendentals=0,
            bytes_accessed=(2 * CKK * T + T) * 4),
    )(wb, p_all)

    # (1, T) lane-dense slab -> (N, num_blocks, oh, ow)  == torch.cat(axis=1)
    out = out_row.reshape(N, num_blocks, out_h, out_w)
    return out, st


def reference_forward(x, weights, starts, *, stride, kernel_size, output_size):
    """Pure-JAX reference (lax conv) using the same random window starts."""
    N, C, H, W = x.shape
    num_blocks = weights.shape[0]
    K = kernel_size
    out_h = output_size[0]
    slice_size = (out_h - 1) * stride + K
    outs = []
    for b in range(num_blocks):
        st = starts[b]
        win = lax.dynamic_slice(x, (0, 0, st, st), (N, C, slice_size, slice_size))
        o = lax.conv_general_dilated(
            win, weights[b], window_strides=(stride, stride), padding="VALID",
            dimension_numbers=("NCHW", "OIHW", "NCHW"),
            precision=lax.Precision.HIGHEST)
        outs.append(o)
    return jnp.concatenate(outs, axis=1)


if __name__ == "__main__":
    # Module config: out_channels == output_size[0] (same implicit constraint as the
    # PyTorch module, since RandomWindowStart has size output_size[0] and is indexed
    # by the block index).
    stride = 2
    out_channels = 4
    kernel_size = 3
    output_size = (4,)

    N, C, H, W = 2, 3, 16, 16

    key = jax.random.PRNGKey(0)
    kx, kw, kwin = jax.random.split(key, 3)
    x = jax.random.normal(kx, (N, C, H, W), dtype=jnp.float32)

    # Deterministic Conv2d(3,1,K,bias=False) init: uniform(-1/sqrt(fan_in), 1/sqrt(fan_in))
    fan_in = C * kernel_size * kernel_size
    bound = 1.0 / (fan_in ** 0.5)
    weights = jax.random.uniform(
        kw, (out_channels, 1, C, kernel_size, kernel_size),
        minval=-bound, maxval=bound, dtype=jnp.float32)

    out, starts = stochastic_conv4_forward(
        x, weights, kwin,
        stride=stride, kernel_size=kernel_size, output_size=output_size)
    out = jax.block_until_ready(out)

    ref = reference_forward(
        x, weights, starts,
        stride=stride, kernel_size=kernel_size, output_size=output_size)

    assert out.shape == (N, out_channels, output_size[0], output_size[0]), out.shape
    assert jnp.allclose(out, ref, atol=1e-5, rtol=1e-5), float(jnp.max(jnp.abs(out - ref)))
    print("KERNEL_OK")
</pallas_src>

<mosaic_0001>
module attributes {stable_mosaic.version = 11 : i64} {
  func.func @_stochastic_conv_kernel(%arg0: i32, %arg1: memref<27x128xf32, #tpu.memory_space<vmem>>, %arg2: memref<27x128xf32, #tpu.memory_space<vmem>>, %arg3: memref<1x128xf32, #tpu.memory_space<vmem>>) attributes {dimension_semantics = [#tpu.dimension_semantics<arbitrary>], iteration_bounds = array<i64: 1>, scalar_prefetch = 0 : i64, scratch_operands = 0 : i64, tpu.core_type = #tpu.core_type<tc>, window_params = [{pipeline_mode = #tpu.pipeline_mode<synchronous>, transform_indices = @transform_0, window_bounds = array<i64: 27, 128>}, {pipeline_mode = #tpu.pipeline_mode<synchronous>, transform_indices = @transform_1, window_bounds = array<i64: 27, 128>}, {pipeline_mode = #tpu.pipeline_mode<synchronous>, transform_indices = @transform_2, window_bounds = array<i64: 1, 128>}]} {
    %c0 = arith.constant 0 : index
    %c0_0 = arith.constant 0 : index
    %0 = vector.load %arg1[%c0, %c0_0] : memref<27x128xf32, #tpu.memory_space<vmem>>, vector<27x128xf32>
    %c0_1 = arith.constant 0 : index
    %c0_2 = arith.constant 0 : index
    %1 = vector.load %arg2[%c0_1, %c0_2] : memref<27x128xf32, #tpu.memory_space<vmem>>, vector<27x128xf32>
    %2 = arith.mulf %0, %1 : vector<27x128xf32>
    %cst = arith.constant dense<0.000000e+00> : vector<128xf32>
    %3 = vector.multi_reduction <add>, %2, %cst [0] : vector<27x128xf32> to vector<128xf32>
    %4 = vector.shape_cast %3 : vector<128xf32> to vector<1x128xf32>
    %c0_3 = arith.constant 0 : index
    %c0_4 = arith.constant 0 : index
    %5 = vector.load %arg3[%c0_3, %c0_4] : memref<1x128xf32, #tpu.memory_space<vmem>>, vector<1x128xf32>
    tpu.vector_store %arg3[%c0_3, %c0_4], %4 {strides = array<i32>} : memref<1x128xf32, #tpu.memory_space<vmem>>, vector<1x128xf32>,
    return
  }
  func.func @transform_0(%arg0: i32) -> (i32, i32) {
    %c0_i32 = arith.constant 0 : i32
    %c0_i32_0 = arith.constant 0 : i32
    %c0_i32_1 = arith.constant 0 : i32
    return %c0_i32, %c0_i32_0 : i32, i32
  }
  func.func @transform_1(%arg0: i32) -> (i32, i32) {
    %c0_i32 = arith.constant 0 : i32
    %c0_i32_0 = arith.constant 0 : i32
    %c0_i32_1 = arith.constant 0 : i32
    return %c0_i32, %c0_i32_0 : i32, i32
  }
  func.func @transform_2(%arg0: i32) -> (i32, i32) {
    %c0_i32 = arith.constant 0 : i32
    %c0_i32_0 = arith.constant 0 : i32
    %c0_i32_1 = arith.constant 0 : i32
    return %c0_i32, %c0_i32_0 : i32, i32
  }
}

</mosaic_0001>

<llo_original>
// kernel: tpu_custom_call.1
$region0: #{tpu_custom_call.1}
  #allocation0 [shape = 'u32[]', space=smem, size = 0x4, offset = 0x4, fixed_abs, tag = 'smem constant byte address 0x4 - core index']
  #allocation1 [shape = 'u32[72,128]{1,0:T(1,128)}', space=vmem, size = 0x9000, scoped, tag = 'internal scratch']
  %s0 = inlined_call_operand.hbm [shape: f32[27,128], index: 0, kind: input, shape index: {}]
  %s1 = inlined_call_operand.hbm [shape: f32[27,128], index: 1, kind: input, shape index: {}]
  %s2 = inlined_call_operand.hbm [shape: f32[1,128], index: 2, kind: output, shape index: {}]
  %s3 = sld [smem:[#allocation0]]
  $region26: #{tpu_custom_call.1} parent=0
    _
  %s5 = ssub.s32 1, %s3
  %s6 = scalar_select 0, %s5, %s3
  $region1: #{tpu_custom_call.1} parent=0
    #allocation2 [shape = 'u8[16384]{0}', space=vmem, size = 0x4000, scoped, tag = 'input window, operand 0, single buffered']
    #allocation3 [shape = 's32[1]{0}', space=sflag, size = 0x4, scoped, tag = 'scoped memory for tpu_custom_call.1']
    #allocation4 [shape = 's32[1]{0}', space=sflag, size = 0x4, scoped, tag = 'scoped memory for tpu_custom_call.1']
    #allocation5 [shape = 'u8[16384]{0}', space=vmem, size = 0x4000, scoped, tag = 'input window, operand 1, single buffered']
    #allocation6 [shape = 's32[1]{0}', space=sflag, size = 0x4, scoped, tag = 'scoped memory for tpu_custom_call.1']
    #allocation7 [shape = 'u8[512]{0}', space=vmem, size = 0x400, scoped, tag = 'output window, operand 0, single buffered']
    %7 = vsyncpa [#allocation3], 0
    %8 = vsyncpa [#allocation6], 0
    %9 = vsyncpa [#allocation4], 0
    // Predicated region
    $region2: #{tpu_custom_call.1} parent=1 // pred_check
      _
    $region3: #{tpu_custom_call.1} parent=1 // pred_check_branch
      %11 = sbr.rel (0) target = $region5
    $region4: #{tpu_custom_call.1} parent=1 // pred_region
      %13 = vsyncadd [#allocation3], 0
      %s14 = sshll.u32 %s0, 4
      %s15 = int_to_ptr.hbm [resolvable:$true] %s14
      %s16 = sshll.u32 [#allocation2], 4
      %s17 = int_to_ptr.vmem [resolvable:$true] %s16
      %22 = dma.hbm_to_vmem [thread:$0]  %s15, 512, %s17, [#allocation3], 128, 128, 8
    $region5: #{tpu_custom_call.1} parent=1 // pred_fallthru
      _
    // Predicated region
    $region6: #{tpu_custom_call.1} parent=1 // pred_check
      _
    $region7: #{tpu_custom_call.1} parent=1 // pred_check_branch
      %24 = sbr.rel (0) target = $region9
    $region8: #{tpu_custom_call.1} parent=1 // pred_region
      %26 = vsyncadd [#allocation6], 0
      %s27 = sshll.u32 %s1, 4
      %s28 = int_to_ptr.hbm [resolvable:$true] %s27
      %s29 = sshll.u32 [#allocation5], 4
      %s30 = int_to_ptr.vmem [resolvable:$true] %s29
      %35 = dma.hbm_to_vmem [thread:$0]  %s28, 512, %s30, [#allocation6], 128, 128, 8
    $region9: #{tpu_custom_call.1} parent=1 // pred_fallthru
      _
    // Predicated region
    $region10: #{tpu_custom_call.1} parent=1 // pred_check
      _
    $region11: #{tpu_custom_call.1} parent=1 // pred_check_branch
      %37 = sbr.rel (0) target = $region13
    $region12: #{tpu_custom_call.1} parent=1 // pred_region
      %39 = dma.done [#allocation3], 512
    $region13: #{tpu_custom_call.1} parent=1 // pred_fallthru
      _
    // Predicated region
    $region14: #{tpu_custom_call.1} parent=1 // pred_check
      _
    $region15: #{tpu_custom_call.1} parent=1 // pred_check_branch
      %41 = sbr.rel (0) target = $region17
    $region16: #{tpu_custom_call.1} parent=1 // pred_region
      %43 = dma.done [#allocation6], 512
    $region17: #{tpu_custom_call.1} parent=1 // pred_fallthru
      _
    %v44 = vld [vmem:[#allocation2] sm:$0xff]
    %v45 = vld [vmem:[#allocation2 + $0x8] sm:$0xff]
    %v46 = vld [vmem:[#allocation2 + $0x10] sm:$0xff]
    %v47 = vld [vmem:[#allocation2 + $0x18] sm:$0x7]
    %v48 = vld [vmem:[#allocation5] sm:$0xff]
    %v49 = vld [vmem:[#allocation5 + $0x8] sm:$0xff]
    %v50 = vld [vmem:[#allocation5 + $0x10] sm:$0xff]
    %v51 = vld [vmem:[#allocation5 + $0x18] sm:$0x7]
    %v52 = vmul.f32 %v44, %v48
    %v53 = vmul.f32 %v45, %v49
    %v54 = vmul.f32 %v46, %v50
    %v55 = vmul.f32 %v47, %v51
    %v56 = vadd.f32 %v52, %v53
    %v57 = vadd.f32 %v56, %v54
    %vm58 = vcmask 1042432
    %v59 = vsel %vm58, %v55, 0.0
    %v60 = vadd.f32 %v57, %v59
    %v61 = vrot.slane %v60, 4
    %v62 = vadd.f32 %v60, %v61
    %v63 = vrot.slane %v62, 2
    %v64 = vadd.f32 %v62, %v63
    %v65 = vrot.slane %v64, 1
    %v66 = vadd.f32 %v64, %v65
    %67 = vst [vmem:[#allocation7] sm:$0x1] %v66
    // Predicated region
    $region18: #{tpu_custom_call.1} parent=1 // pred_check
      _
    $region19: #{tpu_custom_call.1} parent=1 // pred_check_branch
      %69 = sbr.rel (0) target = $region21
    $region20: #{tpu_custom_call.1} parent=1 // pred_region
      %71 = vsyncadd [#allocation4], 0
      %s73 = sshll.u32 [#allocation7], 4
      %s74 = int_to_ptr.vmem [resolvable:$true] %s73
      %s75 = sshll.u32 %s2, 4
      %s76 = int_to_ptr.hbm [resolvable:$true] %s75
      %78 = dma.vmem_to_hbm [thread:$0]  %s74, 16, %s76, [#allocation4]
    $region21: #{tpu_custom_call.1} parent=1 // pred_fallthru
      _
    // Predicated region
    $region22: #{tpu_custom_call.1} parent=1 // pred_check
      _
    $region23: #{tpu_custom_call.1} parent=1 // pred_check_branch
      %80 = sbr.rel (0) target = $region25
    $region24: #{tpu_custom_call.1} parent=1 // pred_region
      %82 = dma.done [#allocation4], 16
    $region25: #{tpu_custom_call.1} parent=1 // pred_fallthru
      _
    %83 = vsyncpa [#allocation3], 1
    %84 = vsyncpa [#allocation6], 1
    %85 = vsyncpa [#allocation4], 1

</llo_original>
